<compile_context>
chip_gen: v7x
topology: tpu7x:2x2x1
jax: 0.10.0
libtpu: 0.0.40
codegen_flags: <defaults>
</compile_context>

<pallas_src>
import math

import jax
import jax.numpy as jnp
from jax.experimental import pallas as pl
from jax.experimental.pallas import tpu as pltpu


# ----------------------------------------------------------------------------
# Pass 1: head-split K/V projections of the text tokens (one batch element/step)
# ----------------------------------------------------------------------------
def kv_proj_kernel(txt_ref, wk_ref, bk_ref, wv_ref, bv_ref, k_ref, v_ref):
    heads = wk_ref.shape[0]
    txt = txt_ref[...].astype(wk_ref.dtype)                       # (S2, D_txt)
    txt_h = jnp.broadcast_to(txt, (heads,) + txt.shape)           # (H, S2, D_txt)
    k = jnp.einsum("hsd,hde->hse", txt_h, wk_ref[...],
                   preferred_element_type=jnp.float32) + bk_ref[...]
    v = jnp.einsum("hsd,hde->hse", txt_h, wv_ref[...],
                   preferred_element_type=jnp.float32) + bv_ref[...]
    k_ref[...] = k.astype(k_ref.dtype)                            # (H, S2, dh)
    v_ref[...] = v.astype(v_ref.dtype)


# ----------------------------------------------------------------------------
# Pass 2: fused Q projection + heads-batched attention + output projection
# ----------------------------------------------------------------------------
def cross_attention_kernel(x_ref, k_ref, v_ref, wq_ref, bq_ref, wo_ref, bo_ref,
                           o_ref):
    heads = k_ref.shape[0]

    x = x_ref[...].astype(wq_ref.dtype)                           # (TS, D) bf16
    x_h = jnp.broadcast_to(x, (heads,) + x.shape)                 # (H, TS, D)

    # Q projection, heads-batched. 1/sqrt(d_head) is folded into wq/bq already.
    q = jnp.einsum("hqd,hde->hqe", x_h, wq_ref[...],
                   preferred_element_type=jnp.float32) + bq_ref[...]
    q = q.astype(k_ref.dtype)                                     # (H, TS, dh)

    k = k_ref[...]                                                # (H, S2, dh)
    v = v_ref[...]                                                # (H, S2, dh)

    # Scores + softmax (f32 elementwise math).
    s = jnp.einsum("hqe,hke->hqk", q, k,
                   preferred_element_type=jnp.float32)            # (H, TS, S2)
    s = s - jnp.max(s, axis=-1, keepdims=True)
    p = jnp.exp(s)
    p = p / jnp.sum(p, axis=-1, keepdims=True)   # exact normalization (review note)

    # Per-head context.
    ctx = jnp.einsum("hqk,hke->hqe", p.astype(v.dtype), v,
                     preferred_element_type=jnp.float32)          # (H, TS, dh)

    # Fused head-merge + output projection: wo_ref is (H, dh, D); the cross-head
    # sum is (H-1) lane-dense VPU adds — no VMEM accumulator, no masked stores.
    part = jnp.einsum("hqe,hed->hqd", ctx.astype(wo_ref.dtype), wo_ref[...],
                      preferred_element_type=jnp.float32)         # (H, TS, D)
    out = part[0]
    for h in range(1, heads):
        out = out + part[h]
    o_ref[...] = (out + bo_ref[...]).astype(o_ref.dtype)          # lane-dense store


# ----------------------------------------------------------------------------
# One-time parameter preparation (do NOT call per forward pass)
# ----------------------------------------------------------------------------
def prepare_params(params, heads, compute_dtype=jnp.bfloat16):
    """Transpose to (in, out), split heads, fold softmax scale, cast to bf16."""
    wq, bq, wk, bk, wv, bv, wo, bo = params
    d = wq.shape[0]
    assert d % heads == 0
    d_head = d // heads
    scale = 1.0 / math.sqrt(d_head)

    def split_out(w_t):  # (in, d) -> (heads, in, d_head)
        din = w_t.shape[0]
        return w_t.reshape(din, heads, d_head).transpose(1, 0, 2)

    wq_h = (split_out(wq.T) * scale).astype(compute_dtype)        # (H, D, dh) pre-scaled
    wk_h = split_out(wk.T).astype(compute_dtype)                  # (H, D_txt, dh)
    wv_h = split_out(wv.T).astype(compute_dtype)                  # (H, D_txt, dh)
    wo_h = wo.T.reshape(heads, d_head, d).astype(compute_dtype)   # (H, dh, D)

    bq_h = (bq.reshape(heads, 1, d_head) * scale).astype(jnp.float32)
    bk_h = bk.reshape(heads, 1, d_head).astype(jnp.float32)
    bv_h = bv.reshape(heads, 1, d_head).astype(jnp.float32)
    bo_r = bo.reshape(1, d).astype(jnp.float32)
    return (wq_h, bq_h, wk_h, bk_h, wv_h, bv_h, wo_h, bo_r)


def _default_tile(s, cap=512):
    """Largest tile <= cap dividing s (multiple of 8); full dim if not 8-aligned."""
    if s % 8 != 0:
        return s
    for cand in (512, 256, 128, 64, 32, 16, 8):
        if cand <= cap and s % cand == 0:
            return cand
    return s


def cross_attention(x, txt, prepared, heads, *, ts=None):
    b, s, d = x.shape
    _, s2, d_txt = txt.shape
    assert d % heads == 0
    d_head = d // heads
    wq_h, bq_h, wk_h, bk_h, wv_h, bv_h, wo_h, bo_r = prepared
    compute_dtype = wq_h.dtype

    if ts is None:
        ts = _default_tile(s)
    assert s % ts == 0

    def wmap3(bi, *_):
        return (0, 0, 0)

    # ---- Pass 1: K/V projections (head-split), grid over batch ----
    k, v = pl.pallas_call(
        kv_proj_kernel,
        out_shape=(jax.ShapeDtypeStruct((b, heads, s2, d_head), compute_dtype),
                   jax.ShapeDtypeStruct((b, heads, s2, d_head), compute_dtype)),
        grid=(b,),
        in_specs=[
            pl.BlockSpec((pl.Squeezed(), s2, d_txt), lambda bi: (bi, 0, 0)),
            pl.BlockSpec((heads, d_txt, d_head), wmap3),
            pl.BlockSpec((heads, 1, d_head), wmap3),
            pl.BlockSpec((heads, d_txt, d_head), wmap3),
            pl.BlockSpec((heads, 1, d_head), wmap3),
        ],
        out_specs=[
            pl.BlockSpec((pl.Squeezed(), heads, s2, d_head), lambda bi: (bi, 0, 0, 0)),
            pl.BlockSpec((pl.Squeezed(), heads, s2, d_head), lambda bi: (bi, 0, 0, 0)),
        ],
        compiler_params=pltpu.CompilerParams(dimension_semantics=("parallel",)),
    )(txt, wk_h, bk_h, wv_h, bv_h)

    # ---- Pass 2: attention + fused output projection ----
    # Both grid axes are independent now (no cross-step scratch state).
    # TODO(synk): on v7x re-derive ts / vmem_limit against 64 MiB VMEM and
    # single-buffer the constant weight specs (pipeline_mode=pl.Buffered(1)).
    return pl.pallas_call(
        cross_attention_kernel,
        out_shape=jax.ShapeDtypeStruct((b, s, d), x.dtype),
        grid=(b, s // ts),
        in_specs=[
            pl.BlockSpec((pl.Squeezed(), ts, d), lambda bi, si: (bi, si, 0)),          # x tile
            pl.BlockSpec((pl.Squeezed(), heads, s2, d_head),
                         lambda bi, si: (bi, 0, 0, 0)),                                # k
            pl.BlockSpec((pl.Squeezed(), heads, s2, d_head),
                         lambda bi, si: (bi, 0, 0, 0)),                                # v
            pl.BlockSpec((heads, d, d_head), wmap3),                                   # wq (pre-scaled)
            pl.BlockSpec((heads, 1, d_head), wmap3),                                   # bq (pre-scaled)
            pl.BlockSpec((heads, d_head, d), wmap3),                                   # wo (head-split)
            pl.BlockSpec((1, d), lambda bi, si: (0, 0)),                               # bo
        ],
        out_specs=pl.BlockSpec((pl.Squeezed(), ts, d), lambda bi, si: (bi, si, 0)),
        compiler_params=pltpu.CompilerParams(
            dimension_semantics=("parallel", "parallel"),
            vmem_limit_bytes=32 * 1024 * 1024),
    )(x, k, v, wq_h, bq_h, wo_h, bo_r)


def reference(x, txt, params, heads):
    """Pure-JAX (f32) mirror of the PyTorch forward (intended semantics)."""
    wq, bq, wk, bk, wv, bv, wo, bo = params
    b, s, d = x.shape
    d_head = d // heads
    q = x @ wq.T + bq
    k = txt @ wk.T + bk
    v = txt @ wv.T + bv
    q = q.reshape(b, s, heads, d_head).transpose(0, 2, 1, 3)
    k = k.reshape(b, -1, heads, d_head).transpose(0, 2, 1, 3)
    v = v.reshape(b, -1, heads, d_head).transpose(0, 2, 1, 3)
    scores = jnp.einsum("bhqd,bhkd->bhqk", q, k) / math.sqrt(d_head)
    p = jax.nn.softmax(scores, axis=-1)
    o = jnp.einsum("bhqk,bhkd->bhqd", p, v)
    o = o.transpose(0, 2, 1, 3).reshape(b, s, d)
    return o @ wo.T + bo


if __name__ == "__main__":
    # Small shapes consistent with the module: x (b, s, d_embed), txt (b, s2, d_txt).
    B, S, D_EMBED = 2, 16, 32
    S2, D_TXT = 8, 48
    HEADS = 4

    key = jax.random.PRNGKey(0)
    keys = jax.random.split(key, 10)

    x = jax.random.normal(keys[0], (B, S, D_EMBED), dtype=jnp.float32)
    txt = jax.random.normal(keys[1], (B, S2, D_TXT), dtype=jnp.float32)

    def init(k, shape, scale=0.05):
        return scale * jax.random.normal(k, shape, dtype=jnp.float32)

    params = (
        init(keys[2], (D_EMBED, D_EMBED)),  # w_q
        init(keys[3], (D_EMBED,)),          # b_q
        init(keys[4], (D_EMBED, D_TXT)),    # w_k
        init(keys[5], (D_EMBED,)),          # b_k
        init(keys[6], (D_EMBED, D_TXT)),    # w_v
        init(keys[7], (D_EMBED,)),          # b_v
        init(keys[8], (D_EMBED, D_EMBED)),  # w_o
        init(keys[9], (D_EMBED,)),          # b_o
    )

    prepared = prepare_params(params, HEADS)   # one-time param prep (not per call)
    out = cross_attention(x, txt, prepared, HEADS)
    out = jax.block_until_ready(out)

    ref = reference(x, txt, params, HEADS)
    assert out.shape == (B, S, D_EMBED)
    # Tolerance reflects bf16 matmul operands (f32 accumulation) vs f32 reference.
    assert jnp.allclose(out, ref, atol=3e-2, rtol=3e-2), (
        f"max abs err {jnp.max(jnp.abs(out - ref))}")

    print("KERNEL_OK")
</pallas_src>

<mosaic_0001>
module attributes {stable_mosaic.version = 11 : i64} {
  func.func @kv_proj_kernel(%arg0: i32, %arg1: memref<1x8x48xf32, #tpu.memory_space<vmem>>, %arg2: memref<4x48x8xbf16, #tpu.memory_space<vmem>>, %arg3: memref<4x1x8xf32, #tpu.memory_space<vmem>>, %arg4: memref<4x48x8xbf16, #tpu.memory_space<vmem>>, %arg5: memref<4x1x8xf32, #tpu.memory_space<vmem>>, %arg6: memref<1x4x8x8xbf16, #tpu.memory_space<vmem>>, %arg7: memref<1x4x8x8xbf16, #tpu.memory_space<vmem>>) attributes {dimension_semantics = [#tpu.dimension_semantics<parallel>], iteration_bounds = array<i64: 2>, scalar_prefetch = 0 : i64, scratch_operands = 0 : i64, tpu.core_type = #tpu.core_type<tc>, window_params = [{transform_indices = @transform_0, window_bounds = array<i64: 1, 8, 48>}, {pipeline_mode = #tpu.pipeline_mode<synchronous>, transform_indices = @transform_1, window_bounds = array<i64: 4, 48, 8>}, {pipeline_mode = #tpu.pipeline_mode<synchronous>, transform_indices = @transform_2, window_bounds = array<i64: 4, 1, 8>}, {pipeline_mode = #tpu.pipeline_mode<synchronous>, transform_indices = @transform_3, window_bounds = array<i64: 4, 48, 8>}, {pipeline_mode = #tpu.pipeline_mode<synchronous>, transform_indices = @transform_4, window_bounds = array<i64: 4, 1, 8>}, {transform_indices = @transform_5, window_bounds = array<i64: 1, 4, 8, 8>}, {transform_indices = @transform_6, window_bounds = array<i64: 1, 4, 8, 8>}]} {
    %c0 = arith.constant 0 : index
    %c0_0 = arith.constant 0 : index
    %c0_1 = arith.constant 0 : index
    %0 = vector.load %arg1[%c0, %c0_0, %c0_1] : memref<1x8x48xf32, #tpu.memory_space<vmem>>, vector<1x8x48xf32>
    %1 = vector.shape_cast %0 : vector<1x8x48xf32> to vector<8x48xf32>
    %2 = arith.truncf %1 : vector<8x48xf32> to vector<8x48xbf16>
    %3 = vector.shape_cast %2 : vector<8x48xbf16> to vector<1x8x48xbf16>
    %4 = vector.broadcast %3 : vector<1x8x48xbf16> to vector<4x8x48xbf16>
    %c0_2 = arith.constant 0 : index
    %c0_3 = arith.constant 0 : index
    %c0_4 = arith.constant 0 : index
    %5 = vector.load %arg2[%c0_2, %c0_3, %c0_4] : memref<4x48x8xbf16, #tpu.memory_space<vmem>>, vector<4x48x8xbf16>
    "tpu.trace_start"() <{level = 10 : i32, message = "hsd,hde->hse"}> : () -> ()
    %cst = arith.constant dense<0.000000e+00> : vector<4x8x8xf32>
    %6 = tpu.matmul %4, %5, %cst {dimension_numbers = #tpu.dot_dimension_numbers<[2], [1], [1], [2], [0, 0, 0, 1, 1, 2], [0], [0]>} : vector<4x8x48xbf16>, vector<4x48x8xbf16>, vector<4x8x8xf32> -> vector<4x8x8xf32>
    "tpu.trace_stop"() : () -> ()
    %c0_5 = arith.constant 0 : index
    %c0_6 = arith.constant 0 : index
    %c0_7 = arith.constant 0 : index
    %7 = vector.load %arg3[%c0_5, %c0_6, %c0_7] : memref<4x1x8xf32, #tpu.memory_space<vmem>>, vector<4x1x8xf32>
    %8 = vector.broadcast %7 : vector<4x1x8xf32> to vector<4x8x8xf32>
    %9 = arith.addf %6, %8 : vector<4x8x8xf32>
    %c0_8 = arith.constant 0 : index
    %c0_9 = arith.constant 0 : index
    %c0_10 = arith.constant 0 : index
    %10 = vector.load %arg4[%c0_8, %c0_9, %c0_10] : memref<4x48x8xbf16, #tpu.memory_space<vmem>>, vector<4x48x8xbf16>
    "tpu.trace_start"() <{level = 10 : i32, message = "hsd,hde->hse"}> : () -> ()
    %cst_11 = arith.constant dense<0.000000e+00> : vector<4x8x8xf32>
    %11 = tpu.matmul %4, %10, %cst_11 {dimension_numbers = #tpu.dot_dimension_numbers<[2], [1], [1], [2], [0, 0, 0, 1, 1, 2], [0], [0]>} : vector<4x8x48xbf16>, vector<4x48x8xbf16>, vector<4x8x8xf32> -> vector<4x8x8xf32>
    "tpu.trace_stop"() : () -> ()
    %c0_12 = arith.constant 0 : index
    %c0_13 = arith.constant 0 : index
    %c0_14 = arith.constant 0 : index
    %12 = vector.load %arg5[%c0_12, %c0_13, %c0_14] : memref<4x1x8xf32, #tpu.memory_space<vmem>>, vector<4x1x8xf32>
    %13 = vector.broadcast %12 : vector<4x1x8xf32> to vector<4x8x8xf32>
    %14 = arith.addf %11, %13 : vector<4x8x8xf32>
    %15 = arith.truncf %9 : vector<4x8x8xf32> to vector<4x8x8xbf16>
    %c0_15 = arith.constant 0 : index
    %c0_16 = arith.constant 0 : index
    %c0_17 = arith.constant 0 : index
    %c0_18 = arith.constant 0 : index
    %16 = vector.load %arg6[%c0_15, %c0_16, %c0_17, %c0_18] : memref<1x4x8x8xbf16, #tpu.memory_space<vmem>>, vector<1x4x8x8xbf16>
    %17 = vector.shape_cast %16 : vector<1x4x8x8xbf16> to vector<4x8x8xbf16>
    %18 = vector.shape_cast %15 : vector<4x8x8xbf16> to vector<1x4x8x8xbf16>
    tpu.vector_store %arg6[%c0_15, %c0_16, %c0_17, %c0_18], %18 {strides = array<i32>} : memref<1x4x8x8xbf16, #tpu.memory_space<vmem>>, vector<1x4x8x8xbf16>,
    %19 = arith.truncf %14 : vector<4x8x8xf32> to vector<4x8x8xbf16>
    %c0_19 = arith.constant 0 : index
    %c0_20 = arith.constant 0 : index
    %c0_21 = arith.constant 0 : index
    %c0_22 = arith.constant 0 : index
    %20 = vector.load %arg7[%c0_19, %c0_20, %c0_21, %c0_22] : memref<1x4x8x8xbf16, #tpu.memory_space<vmem>>, vector<1x4x8x8xbf16>
    %21 = vector.shape_cast %20 : vector<1x4x8x8xbf16> to vector<4x8x8xbf16>
    %22 = vector.shape_cast %19 : vector<4x8x8xbf16> to vector<1x4x8x8xbf16>
    tpu.vector_store %arg7[%c0_19, %c0_20, %c0_21, %c0_22], %22 {strides = array<i32>} : memref<1x4x8x8xbf16, #tpu.memory_space<vmem>>, vector<1x4x8x8xbf16>,
    return
  }
  func.func @transform_0(%arg0: i32) -> (i32, i32, i32) {
    %c0_i32 = arith.constant 0 : i32
    %c0_i32_0 = arith.constant 0 : i32
    %c0_i32_1 = arith.constant 0 : i32
    return %arg0, %c0_i32, %c0_i32_0 : i32, i32, i32
  }
  func.func @transform_1(%arg0: i32) -> (i32, i32, i32) {
    %c0_i32 = arith.constant 0 : i32
    %c0_i32_0 = arith.constant 0 : i32
    %c0_i32_1 = arith.constant 0 : i32
    %c0_i32_2 = arith.constant 0 : i32
    return %c0_i32, %c0_i32_0, %c0_i32_1 : i32, i32, i32
  }
  func.func @transform_2(%arg0: i32) -> (i32, i32, i32) {
    %c0_i32 = arith.constant 0 : i32
    %c0_i32_0 = arith.constant 0 : i32
    %c0_i32_1 = arith.constant 0 : i32
    %c0_i32_2 = arith.constant 0 : i32
    return %c0_i32, %c0_i32_0, %c0_i32_1 : i32, i32, i32
  }
  func.func @transform_3(%arg0: i32) -> (i32, i32, i32) {
    %c0_i32 = arith.constant 0 : i32
    %c0_i32_0 = arith.constant 0 : i32
    %c0_i32_1 = arith.constant 0 : i32
    %c0_i32_2 = arith.constant 0 : i32
    return %c0_i32, %c0_i32_0, %c0_i32_1 : i32, i32, i32
  }
  func.func @transform_4(%arg0: i32) -> (i32, i32, i32) {
    %c0_i32 = arith.constant 0 : i32
    %c0_i32_0 = arith.constant 0 : i32
    %c0_i32_1 = arith.constant 0 : i32
    %c0_i32_2 = arith.constant 0 : i32
    return %c0_i32, %c0_i32_0, %c0_i32_1 : i32, i32, i32
  }
  func.func @transform_5(%arg0: i32) -> (i32, i32, i32, i32) {
    %c0_i32 = arith.constant 0 : i32
    %c0_i32_0 = arith.constant 0 : i32
    %c0_i32_1 = arith.constant 0 : i32
    %c0_i32_2 = arith.constant 0 : i32
    return %arg0, %c0_i32, %c0_i32_0, %c0_i32_1 : i32, i32, i32, i32
  }
  func.func @transform_6(%arg0: i32) -> (i32, i32, i32, i32) {
    %c0_i32 = arith.constant 0 : i32
    %c0_i32_0 = arith.constant 0 : i32
    %c0_i32_1 = arith.constant 0 : i32
    %c0_i32_2 = arith.constant 0 : i32
    return %arg0, %c0_i32, %c0_i32_0, %c0_i32_1 : i32, i32, i32, i32
  }
}

</mosaic_0001>

<llo_original>
// kernel: tpu_custom_call.1
$region0: #{tpu_custom_call.1}
  #allocation0 [shape = 'u32[]', space=smem, size = 0x4, offset = 0x4, fixed_abs, tag = 'smem constant byte address 0x4 - core index']
  #allocation1 [shape = 'u32[144,128]{1,0:T(1,128)}', space=vmem, size = 0x12000, scoped, tag = 'internal scratch']
  %s0 = inlined_call_operand.vmem [shape: f32[2,8,48], index: 0, kind: input, shape index: {}]
  %s1 = inlined_call_operand.vmem [shape: bf16[4,48,8], index: 1, kind: input, shape index: {}]
  %s2 = inlined_call_operand.vmem [shape: f32[4,1,8], index: 2, kind: input, shape index: {}]
  %s3 = inlined_call_operand.vmem [shape: bf16[4,48,8], index: 3, kind: input, shape index: {}]
  %s4 = inlined_call_operand.vmem [shape: f32[4,1,8], index: 4, kind: input, shape index: {}]
  %s5 = inlined_call_operand.hbm [shape: bf16[2,4,8,8], index: 5, kind: output, shape index: {0}]
  %s6 = inlined_call_operand.hbm [shape: bf16[2,4,8,8], index: 6, kind: output, shape index: {1}]
  %7 = xla_tuple %s5, %s6
  %s8 = sld [smem:[#allocation0]]
  $region61: #{tpu_custom_call.1} parent=0
    _
  %s10 = ssub.s32 1, %s8
  %s11 = scalar_select 0, %s10, %s8
  $region1: #{tpu_custom_call.1} parent=0
    #allocation2 [shape = 'u8[16384]{0}', space=vmem, size = 0x4000, scoped, tag = 'output window, operand 0']
    #allocation3 [shape = 's32[2]{0}', space=sflag, size = 0x8, scoped, tag = 'scoped memory for tpu_custom_call.1']
    #allocation4 [shape = 'u8[16384]{0}', space=vmem, size = 0x4000, scoped, tag = 'output window, operand 1']
    #allocation5 [shape = 's32[2]{0}', space=sflag, size = 0x8, scoped, tag = 'scoped memory for tpu_custom_call.1']
    %12 = vsyncpa [#allocation3], 0
    %s13 = scalar_lea.sflag [#allocation3], 1
    %14 = vsyncpa %s13, 0
    %15 = vsyncpa [#allocation5], 0
    %s16 = scalar_lea.sflag [#allocation5], 1
    %17 = vsyncpa %s16, 0
    loop: start=0, step=1, limit=4
    $region2: #{tpu_custom_call.1} parent=1 // loop_pre_header
      _
    $region3: #{tpu_custom_call.1} parent=1 // loop_header
      %s19 = sphi 0, %s23
      %p20 = scmp.ge.s32.totalorder %s19, 4
      %s29 = sphi 0, %s31
      %s32 = sphi 0, %s29
      %s33 = sphi 0, %s32
      %s49 = sphi 0, %s33
      %s53 = sphi 0, %s53
      %s55 = sphi 0, %s53
      %s56 = sphi 0, %s55
      %s70 = sphi 0, %s56
      %s74 = sphi 0, %s74
      %s76 = sphi 0, %s74
      %s77 = sphi 0, %s76
      %s91 = sphi 0, %s77
      %s95 = sphi 0, %s95
      %s97 = sphi 0, %s95
      %s98 = sphi 0, %s97
      %s112 = sphi 0, %s98
      %s116 = sphi 0, %s116
      %s118 = sphi 0, %s116
      %s119 = sphi 0, %s118
      %s133 = sphi 0, %s119
      %s139 = sphi 0, %s141
      %s142 = sphi 0, %s139
      %s143 = sphi 0, %s142
      %s159 = sphi 0, %s143
      %s165 = sphi 0, %s167
      %s168 = sphi 0, %s165
      %s169 = sphi 0, %s168
      %s185 = sphi 0, %s169
    $region4: #{tpu_custom_call.1} parent=1 // loop_header_branch
      %22 = sbr.rel (%p20) target = $region8
    $region5: #{tpu_custom_call.1} parent=1 // loop_body
      %s24 = ssub.s32 %s19, 1
      %s25 = ssub.s32 %s19, 2
      %s26 = sadd.s32 %s19, 1
      %s27 = ssub.s32 %s19, %s26
      %p28 = scmp.eq.s32.totalorder %s27, 0
      %s30 = sadd.s32 %s29, 1
      %s31 = scalar_select %p28, %s29, %s30
      %p34 = pneg %p28
      %p35 = scmp.eq.s32.totalorder %s19, 1
      %p36 = por %p34, %p35
      %p37 = scmp.ne.s32.totalorder %s29, %s32
      %p38 = scmp.eq.s32.totalorder %s19, 0
      %p39 = por %p37, %p38
      %p40 = scmp.ne.s32.totalorder %s29, %s32
      %p41 = scmp.eq.s32.totalorder %s24, 1
      %p42 = por %p40, %p41
      %p43 = scmp.ne.s32.totalorder %s32, %s33
      %p44 = scmp.eq.s32.totalorder %s24, 0
      %p45 = por %p43, %p44
      %p46 = scmp.ne.s32.totalorder %s32, %s33
      %p47 = scmp.eq.s32.totalorder %s25, 1
      %p48 = por %p46, %p47
      %p50 = scmp.ne.s32.totalorder %s33, %s49
      %p51 = scmp.eq.s32.totalorder %s25, 0
      %p52 = por %p50, %p51
      %s54 = sadd.s32 %s53, 1
      %p57 = scmp.eq.s32.totalorder %s19, 1
      %p58 = scmp.ne.s32.totalorder %s53, %s55
      %p59 = scmp.eq.s32.totalorder %s19, 0
      %p60 = por %p58, %p59
      %p61 = scmp.ne.s32.totalorder %s53, %s55
      %p62 = scmp.eq.s32.totalorder %s24, 1
      %p63 = por %p61, %p62
      %p64 = scmp.ne.s32.totalorder %s55, %s56
      %p65 = scmp.eq.s32.totalorder %s24, 0
      %p66 = por %p64, %p65
      %p67 = scmp.ne.s32.totalorder %s55, %s56
      %p68 = scmp.eq.s32.totalorder %s25, 1
      %p69 = por %p67, %p68
      %p71 = scmp.ne.s32.totalorder %s56, %s70
      %p72 = scmp.eq.s32.totalorder %s25, 0
      %p73 = por %p71, %p72
      %s75 = sadd.s32 %s74, 1
      %p78 = scmp.eq.s32.totalorder %s19, 1
      %p79 = scmp.ne.s32.totalorder %s74, %s76
      %p80 = scmp.eq.s32.totalorder %s19, 0
      %p81 = por %p79, %p80
      %p82 = scmp.ne.s32.totalorder %s74, %s76
      %p83 = scmp.eq.s32.totalorder %s24, 1
      %p84 = por %p82, %p83
      %p85 = scmp.ne.s32.totalorder %s76, %s77
      %p86 = scmp.eq.s32.totalorder %s24, 0
      %p87 = por %p85, %p86
      %p88 = scmp.ne.s32.totalorder %s76, %s77
      %p89 = scmp.eq.s32.totalorder %s25, 1
      %p90 = por %p88, %p89
      %p92 = scmp.ne.s32.totalorder %s77, %s91
      %p93 = scmp.eq.s32.totalorder %s25, 0
      %p94 = por %p92, %p93
      %s96 = sadd.s32 %s95, 1
      %p99 = scmp.eq.s32.totalorder %s19, 1
      %p100 = scmp.ne.s32.totalorder %s95, %s97
      %p101 = scmp.eq.s32.totalorder %s19, 0
      %p102 = por %p100, %p101
      %p103 = scmp.ne.s32.totalorder %s95, %s97
      %p104 = scmp.eq.s32.totalorder %s24, 1
      %p105 = por %p103, %p104
      %p106 = scmp.ne.s32.totalorder %s97, %s98
      %p107 = scmp.eq.s32.totalorder %s24, 0
      %p108 = por %p106, %p107
      %p109 = scmp.ne.s32.totalorder %s97, %s98
      %p110 = scmp.eq.s32.totalorder %s25, 1
      %p111 = por %p109, %p110
      %p113 = scmp.ne.s32.totalorder %s98, %s112
      %p114 = scmp.eq.s32.totalorder %s25, 0
      %p115 = por %p113, %p114
      %s117 = sadd.s32 %s116, 1
      %p120 = scmp.eq.s32.totalorder %s19, 1
      %p121 = scmp.ne.s32.totalorder %s116, %s118
      %p122 = scmp.eq.s32.totalorder %s19, 0
      %p123 = por %p121, %p122
      %p124 = scmp.ne.s32.totalorder %s116, %s118
      %p125 = scmp.eq.s32.totalorder %s24, 1
      %p126 = por %p124, %p125
      %p127 = scmp.ne.s32.totalorder %s118, %s119
      %p128 = scmp.eq.s32.totalorder %s24, 0
      %p129 = por %p127, %p128
      %p130 = scmp.ne.s32.totalorder %s118, %s119
      %p131 = scmp.eq.s32.totalorder %s25, 1
      %p132 = por %p130, %p131
      %p134 = scmp.ne.s32.totalorder %s119, %s133
      %p135 = scmp.eq.s32.totalorder %s25, 0
      %p136 = por %p134, %p135
      %s137 = ssub.s32 %s19, %s26
      %p138 = scmp.eq.s32.totalorder %s137, 0
      %s140 = sadd.s32 %s139, 1
      %s141 = scalar_select %p138, %s139, %s140
      %p144 = pneg %p138
      %p145 = scmp.eq.s32.totalorder %s19, 1
      %p146 = por %p144, %p145
      %p147 = scmp.ne.s32.totalorder %s139, %s142
      %p148 = scmp.eq.s32.totalorder %s19, 0
      %p149 = por %p147, %p148
      %p150 = scmp.ne.s32.totalorder %s139, %s142
      %p151 = scmp.eq.s32.totalorder %s24, 1
      %p152 = por %p150, %p151
      %p153 = scmp.ne.s32.totalorder %s142, %s143
      %p154 = scmp.eq.s32.totalorder %s24, 0
      %p155 = por %p153, %p154
      %p156 = scmp.ne.s32.totalorder %s142, %s143
      %p157 = scmp.eq.s32.totalorder %s25, 1
      %p158 = por %p156, %p157
      %p160 = scmp.ne.s32.totalorder %s143, %s159
      %p161 = scmp.eq.s32.totalorder %s25, 0
      %p162 = por %p160, %p161
      %s163 = ssub.s32 %s19, %s26
      %p164 = scmp.eq.s32.totalorder %s163, 0
      %s166 = sadd.s32 %s165, 1
      %s167 = scalar_select %p164, %s165, %s166
      %p170 = pneg %p164
      %p171 = scmp.eq.s32.totalorder %s19, 1
      %p172 = por %p170, %p171
      %p173 = scmp.ne.s32.totalorder %s165, %s168
      %p174 = scmp.eq.s32.totalorder %s19, 0
      %p175 = por %p173, %p174
      %p176 = scmp.ne.s32.totalorder %s165, %s168
      %p177 = scmp.eq.s32.totalorder %s24, 1
      %p178 = por %p176, %p177
      %p179 = scmp.ne.s32.totalorder %s168, %s169
      %p180 = scmp.eq.s32.totalorder %s24, 0
      %p181 = por %p179, %p180
      %p182 = scmp.ne.s32.totalorder %s168, %s169
      %p183 = scmp.eq.s32.totalorder %s25, 1
      %p184 = por %p182, %p183
      %p186 = scmp.ne.s32.totalorder %s169, %s185
      %p187 = scmp.eq.s32.totalorder %s25, 0
      %p188 = por %p186, %p187
      %p189 = scmp.le.s32.totalorder 1, %s19
      %p190 = scmp.lt.s32.totalorder %s19, 3
      %p191 = pnand %p189, %p190
      %p192 = pneg %p191
      // Predicated region
      $region9: #{tpu_custom_call.1} parent=5 // pred_check
        _
      $region10: #{tpu_custom_call.1} parent=5 // pred_check_branch
        %194 = sbr.rel (%p191) target = $region12
      $region11: #{tpu_custom_call.1} parent=5 // pred_region
        %s195 = ssub.s32 %s19, 1
        // Predicated region
        $region13: #{tpu_custom_call.1} parent=11 // pred_check
          %p196 = pneg %p66
        $region14: #{tpu_custom_call.1} parent=11 // pred_check_branch
          %198 = sbr.rel (%p196) target = $region16
        $region15: #{tpu_custom_call.1} parent=11 // pred_region
          _
        $region16: #{tpu_custom_call.1} parent=11 // pred_fallthru
          _
        // Predicated region
        $region17: #{tpu_custom_call.1} parent=11 // pred_check
          %p199 = pneg %p87
        $region18: #{tpu_custom_call.1} parent=11 // pred_check_branch
          %201 = sbr.rel (%p199) target = $region20
        $region19: #{tpu_custom_call.1} parent=11 // pred_region
          _
        $region20: #{tpu_custom_call.1} parent=11 // pred_fallthru
          _
        // Predicated region
        $region21: #{tpu_custom_call.1} parent=11 // pred_check
          %p202 = pneg %p108
        $region22: #{tpu_custom_call.1} parent=11 // pred_check_branch
          %204 = sbr.rel (%p202) target = $region24
        $region23: #{tpu_custom_call.1} parent=11 // pred_region
          _
        $region24: #{tpu_custom_call.1} parent=11 // pred_fallthru
          _
        // Predicated region
        $region25: #{tpu_custom_call.1} parent=11 // pred_check
          %p205 = pneg %p129
        $region26: #{tpu_custom_call.1} parent=11 // pred_check_branch
          %207 = sbr.rel (%p205) target = $region28
        $region27: #{tpu_custom_call.1} parent=11 // pred_region
          _
        $region28: #{tpu_custom_call.1} parent=11 // pred_fallthru
          _
      $region12: #{tpu_custom_call.1} parent=5 // pred_fallthru
        _
      %p208 = scmp.lt.s32.totalorder %s19, 2
      // Predicated region
      $region29: #{tpu_custom_call.1} parent=5 // pred_check
        %p209 = pneg %p208
      $region30: #{tpu_custom_call.1} parent=5 // pred_check_branch
        %211 = sbr.rel (%p209) target = $region32
      $region31: #{tpu_custom_call.1} parent=5 // pred_region
        // Predicated region
        $region33: #{tpu_custom_call.1} parent=31 // pred_check
          %p212 = pneg %p39
        $region34: #{tpu_custom_call.1} parent=31 // pred_check_branch
          %214 = sbr.rel (%p212) target = $region36
        $region35: #{tpu_custom_call.1} parent=31 // pred_region
          %p215 = scmp.lt.s32.totalorder %s19, 1
          %s216 = scalar_select %p215, %s19, 1
          %s217 = smul.addr %s216, 8
          %s218 = scalar_lea.vmem %s0, %s217
        $region36: #{tpu_custom_call.1} parent=31 // pred_fallthru
          _
      $region32: #{tpu_custom_call.1} parent=5 // pred_fallthru
        _
      %p219 = scmp.le.s32.totalorder 1, %s19
      %p220 = scmp.lt.s32.totalorder %s19, 3
      %p221 = pnand %p219, %p220
      %p222 = pneg %p221
      // Predicated region
      $region37: #{tpu_custom_call.1} parent=5 // pred_check
        _
      $region38: #{tpu_custom_call.1} parent=5 // pred_check_branch
        %224 = sbr.rel (%p221) target = $region40
      $region39: #{tpu_custom_call.1} parent=5 // pred_region
        %s225 = ssub.s32 %s19, 1
        %p226 = scmp.lt.s32.totalorder %s24, 1
        %s227 = scalar_select %p226, %s24, 1
        %s228 = smul.addr %s227, 8
        %s229 = scalar_lea.vmem %s0, %s228
        %p230 = pneg %p45
        %p231 = pneg %p42
        %p232 = pneg %p66
        %p233 = pneg %p63
        %p234 = pneg %p87
        %p235 = pneg %p84
        %p236 = pneg %p108
        %p237 = pneg %p105
        %p238 = pneg %p129
        %p239 = pneg %p126
        %p240 = pneg %p155
        %p241 = pneg %p152
        %s242 = sand.u32 %s142, 1
        %s243 = scalar_lea.sflag [#allocation3], %s242
        %s244 = sand.u32 %s142, 1
        %s245 = smul.addr %s244, 16
        %s246 = scalar_lea.vmem [#allocation2], %s245
        %p247 = pneg %p181
        %p248 = pneg %p178
        %s249 = sand.u32 %s168, 1
        %s250 = scalar_lea.sflag [#allocation5], %s249
        %s251 = sand.u32 %s168, 1
        %s252 = smul.addr %s251, 16
        %s253 = scalar_lea.vmem [#allocation4], %s252
        %p254 = scmp.lt.s32.totalorder %s24, 1
        %s255 = scalar_select %p254, %s24, 1
        %s256 = smul.addr %s255, 8
        %s257 = scalar_lea.vmem %s0, %s256
        %v259 = vld [vmem:[%s257] sm:$0xff]
        %v260 = vpack.c.bf16 %v259, %v259
        %v261 = vld [vmem:[%s1] sm:$0xf]
        %v262 = vld [vmem:[%s1 + $0x4] sm:$0xf]
        %v263 = vld [vmem:[%s1 + $0x8] sm:$0xf]
        %v264 = vld [vmem:[%s1 + $0xc] sm:$0xf]
        %v265 = vld [vmem:[%s1 + $0x10] sm:$0xf]
        %v266 = vld [vmem:[%s1 + $0x14] sm:$0xf]
        %v267 = vld [vmem:[%s1 + $0x18] sm:$0xf]
        %v268 = vld [vmem:[%s1 + $0x1c] sm:$0xf]
        %v269 = vld [vmem:[%s1 + $0x20] sm:$0xf]
        %v270 = vld [vmem:[%s1 + $0x24] sm:$0xf]
        %v271 = vld [vmem:[%s1 + $0x28] sm:$0xf]
        %v272 = vld [vmem:[%s1 + $0x2c] sm:$0xf]
        %v273 = vld [vmem:[%s1 + $0x30] sm:$0xf]
        %v274 = vld [vmem:[%s1 + $0x34] sm:$0xf]
        %v275 = vld [vmem:[%s1 + $0x38] sm:$0xf]
        %v276 = vld [vmem:[%s1 + $0x3c] sm:$0xf]
        %v277 = vld [vmem:[%s1 + $0x40] sm:$0xf]
        %v278 = vld [vmem:[%s1 + $0x44] sm:$0xf]
        %v279 = vld [vmem:[%s1 + $0x48] sm:$0xf]
        %v280 = vld [vmem:[%s1 + $0x4c] sm:$0xf]
        %v281 = vld [vmem:[%s1 + $0x50] sm:$0xf]
        %v282 = vld [vmem:[%s1 + $0x54] sm:$0xf]
        %v283 = vld [vmem:[%s1 + $0x58] sm:$0xf]
        %v284 = vld [vmem:[%s1 + $0x5c] sm:$0xf]
        %v285 = vld [vmem:[%s2] sm:$0x1]
        %v286 = vld [vmem:[%s2 + $0x1] sm:$0x1]
        %v287 = vld [vmem:[%s2 + $0x2] sm:$0x1]
        %v288 = vld [vmem:[%s2 + $0x3] sm:$0x1]
        %v293 = vlaneseq
        %v294 = vshrl.u32 %v293, 7
        %v295 = vsub.s32 0, %v294
        %v296 = vrot.slane %v285, %v295
        %v297 = vlaneseq
        %v298 = vshrl.u32 %v297, 7
        %v299 = vsub.s32 0, %v298
        %v300 = vrot.slane %v286, %v299
        %v301 = vlaneseq
        %v302 = vshrl.u32 %v301, 7
        %v303 = vsub.s32 0, %v302
        %v304 = vrot.slane %v287, %v303
        %v305 = vlaneseq
        %v306 = vshrl.u32 %v305, 7
        %v307 = vsub.s32 0, %v306
        %v308 = vrot.slane %v288, %v307
        %v319 = vunpack.c.l.b16 %v261
        %v320 = vunpack.c.l.b16 %v262
        %v321 = vunpack.c.l.b16 %v263
        %v322 = vunpack.c.l.b16 %v264
        %v323 = vunpack.c.l.b16 %v265
        %v324 = vunpack.c.l.b16 %v266
        %v325 = vpack.c.b16 %v320, %v319
        %v326 = vpack.c.b16 %v322, %v321
        %v327 = vpack.c.b16 %v324, %v323
        %vm331 = vcmask 392192
        %v333 = vsel %vm331, %v260, 0
        %335 = vmatprep.subr.bf16.mxu0 0
        %336 = vmatpush1.bf16.msra.mxu0 %v325
        %337 = vmatprep.subr.bf16.mxu0 0
        %338 = vmatpush1.bf16.msra.mxu0 %v326
        %339 = vmatprep.subr.bf16.mxu0 0
        %340 = vmatpush1.bf16.msra.mxu0 %v327
        %341 = vmatprep.subr.bf16.mxu0 0
        %342 = vmatpush1.bf16.msra.mxu0 0
        %343 = vmatprep.subr.bf16.mxu0 0
        %344 = vmatpush1.bf16.msra.mxu0 0
        %345 = vmatprep.subr.bf16.mxu0 0
        %346 = vmatpush1.bf16.msra.mxu0 0
        %347 = vmatprep.subr.bf16.mxu0 0
        %348 = vmatpush1.bf16.msra.mxu0 0
        %349 = vmatprep.subr.bf16.mxu0 0
        %350 = vmatpush1.bf16.msra.mxu0 0
        %351 = vmatprep.subr.bf16.mxu0 0
        %352 = vmatpush1.bf16.msra.mxu0 0
        %353 = vmatprep.subr.bf16.mxu0 0
        %354 = vmatpush1.bf16.msra.mxu0 0
        %355 = vmatprep.subr.bf16.mxu0 0
        %356 = vmatpush1.bf16.msra.mxu0 0
        %357 = vmatprep.subr.bf16.mxu0 0
        %358 = vmatpush1.bf16.msra.mxu0 0
        %359 = vmatprep.subr.bf16.mxu0 0
        %360 = vmatpush1.bf16.msra.mxu0 0
        %361 = vmatprep.subr.bf16.mxu0 0
        %362 = vmatpush1.bf16.msra.mxu0 0
        %363 = vmatprep.subr.bf16.mxu0 0
        %364 = vmatpush1.bf16.msra.mxu0 0
        %365 = vmatprep.subr.bf16.mxu0 0
        %366 = vmatpush1.bf16.msra.mxu0 0
        %367 = vmatprep.mubr.bf16.mxu0 0
        %368 = vmatmul.mubr.bf16.gmra.mrb[0].mxu0 %v333
        %v369 = vpop.f32.mrb[0].mxu0
        %v370 = vadd.f32 %v296, %v369
        %v371 = vpop.f32.mrb[0].mxu0
        %v372 = vpop.f32.mrb[0].mxu0
        %v373 = vpop.f32.mrb[0].mxu0
        %374 = vdwg.mxu0
        %v381 = vunpack.c.l.b16 %v267
        %v382 = vunpack.c.l.b16 %v268
        %v383 = vunpack.c.l.b16 %v269
        %v384 = vunpack.c.l.b16 %v270
        %v385 = vunpack.c.l.b16 %v271
        %v386 = vunpack.c.l.b16 %v272
        %v387 = vpack.c.b16 %v382, %v381
        %v388 = vpack.c.b16 %v384, %v383
        %v389 = vpack.c.b16 %v386, %v385
        %393 = vmatprep.subr.bf16.mxu0 0
        %394 = vmatpush1.bf16.msra.mxu0 %v387
        %395 = vmatprep.subr.bf16.mxu0 0
        %396 = vmatpush1.bf16.msra.mxu0 %v388
        %397 = vmatprep.subr.bf16.mxu0 0
        %398 = vmatpush1.bf16.msra.mxu0 %v389
        %399 = vmatprep.subr.bf16.mxu0 0
        %400 = vmatpush1.bf16.msra.mxu0 0
        %401 = vmatprep.subr.bf16.mxu0 0
        %402 = vmatpush1.bf16.msra.mxu0 0
        %403 = vmatprep.subr.bf16.mxu0 0
        %404 = vmatpush1.bf16.msra.mxu0 0
        %405 = vmatprep.subr.bf16.mxu0 0
        %406 = vmatpush1.bf16.msra.mxu0 0
        %407 = vmatprep.subr.bf16.mxu0 0
        %408 = vmatpush1.bf16.msra.mxu0 0
        %409 = vmatprep.subr.bf16.mxu0 0
        %410 = vmatpush1.bf16.msra.mxu0 0
        %411 = vmatprep.subr.bf16.mxu0 0
        %412 = vmatpush1.bf16.msra.mxu0 0
        %413 = vmatprep.subr.bf16.mxu0 0
        %414 = vmatpush1.bf16.msra.mxu0 0
        %415 = vmatprep.subr.bf16.mxu0 0
        %416 = vmatpush1.bf16.msra.mxu0 0
        %417 = vmatprep.subr.bf16.mxu0 0
        %418 = vmatpush1.bf16.msra.mxu0 0
        %419 = vmatprep.subr.bf16.mxu0 0
        %420 = vmatpush1.bf16.msra.mxu0 0
        %421 = vmatprep.subr.bf16.mxu0 0
        %422 = vmatpush1.bf16.msra.mxu0 0
        %423 = vmatprep.subr.bf16.mxu0 0
        %424 = vmatpush1.bf16.msra.mxu0 0
        %425 = vmatprep.mubr.bf16.mxu0 0
        %426 = vmatmul.mubr.bf16.gmra.mrb[0].mxu0 %v333
        %v427 = vpop.f32.mrb[0].mxu0
        %v428 = vadd.f32 %v300, %v427
        %v429 = vpop.f32.mrb[0].mxu0
        %v430 = vpop.f32.mrb[0].mxu0
        %v431 = vpop.f32.mrb[0].mxu0
        %432 = vdwg.mxu0
        %v439 = vunpack.c.l.b16 %v273
        %v440 = vunpack.c.l.b16 %v274
        %v441 = vunpack.c.l.b16 %v275
        %v442 = vunpack.c.l.b16 %v276
        %v443 = vunpack.c.l.b16 %v277
        %v444 = vunpack.c.l.b16 %v278
        %v445 = vpack.c.b16 %v440, %v439
        %v446 = vpack.c.b16 %v442, %v441
        %v447 = vpack.c.b16 %v444, %v443
        %451 = vmatprep.subr.bf16.mxu0 0
        %452 = vmatpush1.bf16.msra.mxu0 %v445
        %453 = vmatprep.subr.bf16.mxu0 0
        %454 = vmatpush1.bf16.msra.mxu0 %v446
        %455 = vmatprep.subr.bf16.mxu0 0
        %456 = vmatpush1.bf16.msra.mxu0 %v447
        %457 = vmatprep.subr.bf16.mxu0 0
        %458 = vmatpush1.bf16.msra.mxu0 0
        %459 = vmatprep.subr.bf16.mxu0 0
        %460 = vmatpush1.bf16.msra.mxu0 0
        %461 = vmatprep.subr.bf16.mxu0 0
        %462 = vmatpush1.bf16.msra.mxu0 0
        %463 = vmatprep.subr.bf16.mxu0 0
        %464 = vmatpush1.bf16.msra.mxu0 0
        %465 = vmatprep.subr.bf16.mxu0 0
        %466 = vmatpush1.bf16.msra.mxu0 0
        %467 = vmatprep.subr.bf16.mxu0 0
        %468 = vmatpush1.bf16.msra.mxu0 0
        %469 = vmatprep.subr.bf16.mxu0 0
        %470 = vmatpush1.bf16.msra.mxu0 0
        %471 = vmatprep.subr.bf16.mxu0 0
        %472 = vmatpush1.bf16.msra.mxu0 0
        %473 = vmatprep.subr.bf16.mxu0 0
        %474 = vmatpush1.bf16.msra.mxu0 0
        %475 = vmatprep.subr.bf16.mxu0 0
        %476 = vmatpush1.bf16.msra.mxu0 0
        %477 = vmatprep.subr.bf16.mxu0 0
        %478 = vmatpush1.bf16.msra.mxu0 0
        %479 = vmatprep.subr.bf16.mxu0 0
        %480 = vmatpush1.bf16.msra.mxu0 0
        %481 = vmatprep.subr.bf16.mxu0 0
        %482 = vmatpush1.bf16.msra.mxu0 0
        %483 = vmatprep.mubr.bf16.mxu0 0
        %484 = vmatmul.mubr.bf16.gmra.mrb[0].mxu0 %v333
        %v485 = vpop.f32.mrb[0].mxu0
        %v486 = vadd.f32 %v304, %v485
        %v487 = vpop.f32.mrb[0].mxu0
        %v488 = vpop.f32.mrb[0].mxu0
        %v489 = vpop.f32.mrb[0].mxu0
        %490 = vdwg.mxu0
        %v497 = vunpack.c.l.b16 %v279
        %v498 = vunpack.c.l.b16 %v280
        %v499 = vunpack.c.l.b16 %v281
        %v500 = vunpack.c.l.b16 %v282
        %v501 = vunpack.c.l.b16 %v283
        %v502 = vunpack.c.l.b16 %v284
        %v503 = vpack.c.b16 %v498, %v497
        %v504 = vpack.c.b16 %v500, %v499
        %v505 = vpack.c.b16 %v502, %v501
        %509 = vmatprep.subr.bf16.mxu0 0
        %510 = vmatpush1.bf16.msra.mxu0 %v503
        %511 = vmatprep.subr.bf16.mxu0 0
        %512 = vmatpush1.bf16.msra.mxu0 %v504
        %513 = vmatprep.subr.bf16.mxu0 0
        %514 = vmatpush1.bf16.msra.mxu0 %v505
        %515 = vmatprep.subr.bf16.mxu0 0
        %516 = vmatpush1.bf16.msra.mxu0 0
        %517 = vmatprep.subr.bf16.mxu0 0
        %518 = vmatpush1.bf16.msra.mxu0 0
        %519 = vmatprep.subr.bf16.mxu0 0
        %520 = vmatpush1.bf16.msra.mxu0 0
        %521 = vmatprep.subr.bf16.mxu0 0
        %522 = vmatpush1.bf16.msra.mxu0 0
        %523 = vmatprep.subr.bf16.mxu0 0
        %524 = vmatpush1.bf16.msra.mxu0 0
        %525 = vmatprep.subr.bf16.mxu0 0
        %526 = vmatpush1.bf16.msra.mxu0 0
        %527 = vmatprep.subr.bf16.mxu0 0
        %528 = vmatpush1.bf16.msra.mxu0 0
        %529 = vmatprep.subr.bf16.mxu0 0
        %530 = vmatpush1.bf16.msra.mxu0 0
        %531 = vmatprep.subr.bf16.mxu0 0
        %532 = vmatpush1.bf16.msra.mxu0 0
        %533 = vmatprep.subr.bf16.mxu0 0
        %534 = vmatpush1.bf16.msra.mxu0 0
        %535 = vmatprep.subr.bf16.mxu0 0
        %536 = vmatpush1.bf16.msra.mxu0 0
        %537 = vmatprep.subr.bf16.mxu0 0
        %538 = vmatpush1.bf16.msra.mxu0 0
        %539 = vmatprep.subr.bf16.mxu0 0
        %540 = vmatpush1.bf16.msra.mxu0 0
        %541 = vmatprep.mubr.bf16.mxu0 0
        %542 = vmatmul.mubr.bf16.gmra.mrb[0].mxu0 %v333
        %v543 = vpop.f32.mrb[0].mxu0
        %v544 = vadd.f32 %v308, %v543
        %v545 = vpop.f32.mrb[0].mxu0
        %v546 = vpop.f32.mrb[0].mxu0
        %v547 = vpop.f32.mrb[0].mxu0
        %548 = vdwg.mxu0
        %v549 = vld [vmem:[%s3] sm:$0xf]
        %v550 = vld [vmem:[%s3 + $0x4] sm:$0xf]
        %v551 = vld [vmem:[%s3 + $0x8] sm:$0xf]
        %v552 = vld [vmem:[%s3 + $0xc] sm:$0xf]
        %v553 = vld [vmem:[%s3 + $0x10] sm:$0xf]
        %v554 = vld [vmem:[%s3 + $0x14] sm:$0xf]
        %v555 = vld [vmem:[%s3 + $0x18] sm:$0xf]
        %v556 = vld [vmem:[%s3 + $0x1c] sm:$0xf]
        %v557 = vld [vmem:[%s3 + $0x20] sm:$0xf]
        %v558 = vld [vmem:[%s3 + $0x24] sm:$0xf]
        %v559 = vld [vmem:[%s3 + $0x28] sm:$0xf]
        %v560 = vld [vmem:[%s3 + $0x2c] sm:$0xf]
        %v561 = vld [vmem:[%s3 + $0x30] sm:$0xf]
        %v562 = vld [vmem:[%s3 + $0x34] sm:$0xf]
        %v563 = vld [vmem:[%s3 + $0x38] sm:$0xf]
        %v564 = vld [vmem:[%s3 + $0x3c] sm:$0xf]
        %v565 = vld [vmem:[%s3 + $0x40] sm:$0xf]
        %v566 = vld [vmem:[%s3 + $0x44] sm:$0xf]
        %v567 = vld [vmem:[%s3 + $0x48] sm:$0xf]
        %v568 = vld [vmem:[%s3 + $0x4c] sm:$0xf]
        %v569 = vld [vmem:[%s3 + $0x50] sm:$0xf]
        %v570 = vld [vmem:[%s3 + $0x54] sm:$0xf]
        %v571 = vld [vmem:[%s3 + $0x58] sm:$0xf]
        %v572 = vld [vmem:[%s3 + $0x5c] sm:$0xf]
        %v573 = vld [vmem:[%s4] sm:$0x1]
        %v574 = vld [vmem:[%s4 + $0x1] sm:$0x1]
        %v575 = vld [vmem:[%s4 + $0x2] sm:$0x1]
        %v576 = vld [vmem:[%s4 + $0x3] sm:$0x1]
        %v581 = vlaneseq
        %v582 = vshrl.u32 %v581, 7
        %v583 = vsub.s32 0, %v582
        %v584 = vrot.slane %v573, %v583
        %v585 = vlaneseq
        %v586 = vshrl.u32 %v585, 7
        %v587 = vsub.s32 0, %v586
        %v588 = vrot.slane %v574, %v587
        %v589 = vlaneseq
        %v590 = vshrl.u32 %v589, 7
        %v591 = vsub.s32 0, %v590
        %v592 = vrot.slane %v575, %v591
        %v593 = vlaneseq
        %v594 = vshrl.u32 %v593, 7
        %v595 = vsub.s32 0, %v594
        %v596 = vrot.slane %v576, %v595
        %v607 = vunpack.c.l.b16 %v549
        %v608 = vunpack.c.l.b16 %v550
        %v609 = vunpack.c.l.b16 %v551
        %v610 = vunpack.c.l.b16 %v552
        %v611 = vunpack.c.l.b16 %v553
        %v612 = vunpack.c.l.b16 %v554
        %v613 = vpack.c.b16 %v608, %v607
        %v614 = vpack.c.b16 %v610, %v609
        %v615 = vpack.c.b16 %v612, %v611
        %619 = vmatprep.subr.bf16.mxu0 0
        %620 = vmatpush1.bf16.msra.mxu0 %v613
        %621 = vmatprep.subr.bf16.mxu0 0
        %622 = vmatpush1.bf16.msra.mxu0 %v614
        %623 = vmatprep.subr.bf16.mxu0 0
        %624 = vmatpush1.bf16.msra.mxu0 %v615
        %625 = vmatprep.subr.bf16.mxu0 0
        %626 = vmatpush1.bf16.msra.mxu0 0
        %627 = vmatprep.subr.bf16.mxu0 0
        %628 = vmatpush1.bf16.msra.mxu0 0
        %629 = vmatprep.subr.bf16.mxu0 0
        %630 = vmatpush1.bf16.msra.mxu0 0
        %631 = vmatprep.subr.bf16.mxu0 0
        %632 = vmatpush1.bf16.msra.mxu0 0
        %633 = vmatprep.subr.bf16.mxu0 0
        %634 = vmatpush1.bf16.msra.mxu0 0
        %635 = vmatprep.subr.bf16.mxu0 0
        %636 = vmatpush1.bf16.msra.mxu0 0
        %637 = vmatprep.subr.bf16.mxu0 0
        %638 = vmatpush1.bf16.msra.mxu0 0
        %639 = vmatprep.subr.bf16.mxu0 0
        %640 = vmatpush1.bf16.msra.mxu0 0
        %641 = vmatprep.subr.bf16.mxu0 0
        %642 = vmatpush1.bf16.msra.mxu0 0
        %643 = vmatprep.subr.bf16.mxu0 0
        %644 = vmatpush1.bf16.msra.mxu0 0
        %645 = vmatprep.subr.bf16.mxu0 0
        %646 = vmatpush1.bf16.msra.mxu0 0
        %647 = vmatprep.subr.bf16.mxu0 0
        %648 = vmatpush1.bf16.msra.mxu0 0
        %649 = vmatprep.subr.bf16.mxu0 0
        %650 = vmatpush1.bf16.msra.mxu0 0
        %651 = vmatprep.mubr.bf16.mxu0 0
        %652 = vmatmul.mubr.bf16.gmra.mrb[0].mxu0 %v333
        %v653 = vpop.f32.mrb[0].mxu0
        %v654 = vadd.f32 %v584, %v653
        %v655 = vpop.f32.mrb[0].mxu0
        %v656 = vpop.f32.mrb[0].mxu0
        %v657 = vpop.f32.mrb[0].mxu0
        %658 = vdwg.mxu0
        %v665 = vunpack.c.l.b16 %v555
        %v666 = vunpack.c.l.b16 %v556
        %v667 = vunpack.c.l.b16 %v557
        %v668 = vunpack.c.l.b16 %v558
        %v669 = vunpack.c.l.b16 %v559
        %v670 = vunpack.c.l.b16 %v560
        %v671 = vpack.c.b16 %v666, %v665
        %v672 = vpack.c.b16 %v668, %v667
        %v673 = vpack.c.b16 %v670, %v669
        %677 = vmatprep.subr.bf16.mxu0 0
        %678 = vmatpush1.bf16.msra.mxu0 %v671
        %679 = vmatprep.subr.bf16.mxu0 0
        %680 = vmatpush1.bf16.msra.mxu0 %v672
        %681 = vmatprep.subr.bf16.mxu0 0
        %682 = vmatpush1.bf16.msra.mxu0 %v673
        %683 = vmatprep.subr.bf16.mxu0 0
        %684 = vmatpush1.bf16.msra.mxu0 0
        %685 = vmatprep.subr.bf16.mxu0 0
        %686 = vmatpush1.bf16.msra.mxu0 0
        %687 = vmatprep.subr.bf16.mxu0 0
        %688 = vmatpush1.bf16.msra.mxu0 0
        %689 = vmatprep.subr.bf16.mxu0 0
        %690 = vmatpush1.bf16.msra.mxu0 0
        %691 = vmatprep.subr.bf16.mxu0 0
        %692 = vmatpush1.bf16.msra.mxu0 0
        %693 = vmatprep.subr.bf16.mxu0 0
        %694 = vmatpush1.bf16.msra.mxu0 0
        %695 = vmatprep.subr.bf16.mxu0 0
        %696 = vmatpush1.bf16.msra.mxu0 0
        %697 = vmatprep.subr.bf16.mxu0 0
        %698 = vmatpush1.bf16.msra.mxu0 0
        %699 = vmatprep.subr.bf16.mxu0 0
        %700 = vmatpush1.bf16.msra.mxu0 0
        %701 = vmatprep.subr.bf16.mxu0 0
        %702 = vmatpush1.bf16.msra.mxu0 0
        %703 = vmatprep.subr.bf16.mxu0 0
        %704 = vmatpush1.bf16.msra.mxu0 0
        %705 = vmatprep.subr.bf16.mxu0 0
        %706 = vmatpush1.bf16.msra.mxu0 0
        %707 = vmatprep.subr.bf16.mxu0 0
        %708 = vmatpush1.bf16.msra.mxu0 0
        %709 = vmatprep.mubr.bf16.mxu0 0
        %710 = vmatmul.mubr.bf16.gmra.mrb[0].mxu0 %v333
        %v711 = vpop.f32.mrb[0].mxu0
        %v712 = vadd.f32 %v588, %v711
        %v713 = vpop.f32.mrb[0].mxu0
        %v714 = vpop.f32.mrb[0].mxu0
        %v715 = vpop.f32.mrb[0].mxu0
        %716 = vdwg.mxu0
        %v723 = vunpack.c.l.b16 %v561
        %v724 = vunpack.c.l.b16 %v562
        %v725 = vunpack.c.l.b16 %v563
        %v726 = vunpack.c.l.b16 %v564
        %v727 = vunpack.c.l.b16 %v565
        %v728 = vunpack.c.l.b16 %v566
        %v729 = vpack.c.b16 %v724, %v723
        %v730 = vpack.c.b16 %v726, %v725
        %v731 = vpack.c.b16 %v728, %v727
        %735 = vmatprep.subr.bf16.mxu0 0
        %736 = vmatpush1.bf16.msra.mxu0 %v729
        %737 = vmatprep.subr.bf16.mxu0 0
        %738 = vmatpush1.bf16.msra.mxu0 %v730
        %739 = vmatprep.subr.bf16.mxu0 0
        %740 = vmatpush1.bf16.msra.mxu0 %v731
        %741 = vmatprep.subr.bf16.mxu0 0
        %742 = vmatpush1.bf16.msra.mxu0 0
        %743 = vmatprep.subr.bf16.mxu0 0
        %744 = vmatpush1.bf16.msra.mxu0 0
        %745 = vmatprep.subr.bf16.mxu0 0
        %746 = vmatpush1.bf16.msra.mxu0 0
        %747 = vmatprep.subr.bf16.mxu0 0
        %748 = vmatpush1.bf16.msra.mxu0 0
        %749 = vmatprep.subr.bf16.mxu0 0
        %750 = vmatpush1.bf16.msra.mxu0 0
        %751 = vmatprep.subr.bf16.mxu0 0
        %752 = vmatpush1.bf16.msra.mxu0 0
        %753 = vmatprep.subr.bf16.mxu0 0
        %754 = vmatpush1.bf16.msra.mxu0 0
        %755 = vmatprep.subr.bf16.mxu0 0
        %756 = vmatpush1.bf16.msra.mxu0 0
        %757 = vmatprep.subr.bf16.mxu0 0
        %758 = vmatpush1.bf16.msra.mxu0 0
        %759 = vmatprep.subr.bf16.mxu0 0
        %760 = vmatpush1.bf16.msra.mxu0 0
        %761 = vmatprep.subr.bf16.mxu0 0
        %762 = vmatpush1.bf16.msra.mxu0 0
        %763 = vmatprep.subr.bf16.mxu0 0
        %764 = vmatpush1.bf16.msra.mxu0 0
        %765 = vmatprep.subr.bf16.mxu0 0
        %766 = vmatpush1.bf16.msra.mxu0 0
        %767 = vmatprep.mubr.bf16.mxu0 0
        %768 = vmatmul.mubr.bf16.gmra.mrb[0].mxu0 %v333
        %v769 = vpop.f32.mrb[0].mxu0
        %v770 = vadd.f32 %v592, %v769
        %v771 = vpop.f32.mrb[0].mxu0
        %v772 = vpop.f32.mrb[0].mxu0
        %v773 = vpop.f32.mrb[0].mxu0
        %774 = vdwg.mxu0
        %v781 = vunpack.c.l.b16 %v567
        %v782 = vunpack.c.l.b16 %v568
        %v783 = vunpack.c.l.b16 %v569
        %v784 = vunpack.c.l.b16 %v570
        %v785 = vunpack.c.l.b16 %v571
        %v786 = vunpack.c.l.b16 %v572
        %v787 = vpack.c.b16 %v782, %v781
        %v788 = vpack.c.b16 %v784, %v783
        %v789 = vpack.c.b16 %v786, %v785
        %793 = vmatprep.subr.bf16.mxu0 0
        %794 = vmatpush1.bf16.msra.mxu0 %v787
        %795 = vmatprep.subr.bf16.mxu0 0
        %796 = vmatpush1.bf16.msra.mxu0 %v788
        %797 = vmatprep.subr.bf16.mxu0 0
        %798 = vmatpush1.bf16.msra.mxu0 %v789
        %799 = vmatprep.subr.bf16.mxu0 0
        %800 = vmatpush1.bf16.msra.mxu0 0
        %801 = vmatprep.subr.bf16.mxu0 0
        %802 = vmatpush1.bf16.msra.mxu0 0
        %803 = vmatprep.subr.bf16.mxu0 0
        %804 = vmatpush1.bf16.msra.mxu0 0
        %805 = vmatprep.subr.bf16.mxu0 0
        %806 = vmatpush1.bf16.msra.mxu0 0
        %807 = vmatprep.subr.bf16.mxu0 0
        %808 = vmatpush1.bf16.msra.mxu0 0
        %809 = vmatprep.subr.bf16.mxu0 0
        %810 = vmatpush1.bf16.msra.mxu0 0
        %811 = vmatprep.subr.bf16.mxu0 0
        %812 = vmatpush1.bf16.msra.mxu0 0
        %813 = vmatprep.subr.bf16.mxu0 0
        %814 = vmatpush1.bf16.msra.mxu0 0
        %815 = vmatprep.subr.bf16.mxu0 0
        %816 = vmatpush1.bf16.msra.mxu0 0
        %817 = vmatprep.subr.bf16.mxu0 0
        %818 = vmatpush1.bf16.msra.mxu0 0
        %819 = vmatprep.subr.bf16.mxu0 0
        %820 = vmatpush1.bf16.msra.mxu0 0
        %821 = vmatprep.subr.bf16.mxu0 0
        %822 = vmatpush1.bf16.msra.mxu0 0
        %823 = vmatprep.subr.bf16.mxu0 0
        %824 = vmatpush1.bf16.msra.mxu0 0
        %825 = vmatprep.mubr.bf16.mxu0 0
        %826 = vmatmul.mubr.bf16.gmra.mrb[0].mxu0 %v333
        %v827 = vpop.f32.mrb[0].mxu0
        %v828 = vadd.f32 %v596, %v827
        %v829 = vpop.f32.mrb[0].mxu0
        %v830 = vpop.f32.mrb[0].mxu0
        %v831 = vpop.f32.mrb[0].mxu0
        %832 = vdwg.mxu0
        %v833 = vpack.c.bf16 %v370, %v370
        %v834 = vpack.c.bf16 %v428, %v428
        %v835 = vpack.c.bf16 %v486, %v486
        %v836 = vpack.c.bf16 %v544, %v544
        %vm837 = vcmask 60416
        %838 = vst.msk [vmem:[%s246] sm:$0xf] %vm837, %v833
        %839 = vst.msk [vmem:[%s246 + $0x4] sm:$0xf] %vm837, %v834
        %840 = vst.msk [vmem:[%s246 + $0x8] sm:$0xf] %vm837, %v835
        %841 = vst.msk [vmem:[%s246 + $0xc] sm:$0xf] %vm837, %v836
        %v842 = vpack.c.bf16 %v654, %v654
        %v843 = vpack.c.bf16 %v712, %v712
        %v844 = vpack.c.bf16 %v770, %v770
        %v845 = vpack.c.bf16 %v828, %v828
        %846 = vst.msk [vmem:[%s253] sm:$0xf] %vm837, %v842
        %847 = vst.msk [vmem:[%s253 + $0x4] sm:$0xf] %vm837, %v843
        %848 = vst.msk [vmem:[%s253 + $0x8] sm:$0xf] %vm837, %v844
        %849 = vst.msk [vmem:[%s253 + $0xc] sm:$0xf] %vm837, %v845
        %s850 = sand.u32 %s142, 1
        %s851 = scalar_lea.sflag [#allocation3], %s850
        %s852 = sand.u32 %s142, 1
        %s853 = smul.addr %s852, 16
        %s854 = scalar_lea.vmem [#allocation2], %s853
        %s855 = sand.u32 %s168, 1
        %s856 = scalar_lea.sflag [#allocation5], %s855
        %s857 = sand.u32 %s168, 1
        %s858 = smul.addr %s857, 16
        %s859 = scalar_lea.vmem [#allocation4], %s858
        // Predicated region
        $region41: #{tpu_custom_call.1} parent=39 // pred_check
          %p860 = pneg %p152
        $region42: #{tpu_custom_call.1} parent=39 // pred_check_branch
          %862 = sbr.rel (%p860) target = $region44
        $region43: #{tpu_custom_call.1} parent=39 // pred_region
          %s864 = ssub.s32 256, 256
          %865 = vsyncadd %s851, %s864
          %s866 = smul.addr %s24, 4
          %s867 = smul.addr %s866, 64
          %s868 = scalar_lea.hbm %s5, %s867
          %s869 = sshll.u32 %s854, 4
          %s870 = int_to_ptr.vmem [resolvable:$true] %s869
          %875 = dma.vmem_to_hbm [thread:$0]  %s870, 256, %s868, %s851, 64, 64, 4
        $region44: #{tpu_custom_call.1} parent=39 // pred_fallthru
          _
        // Predicated region
        $region45: #{tpu_custom_call.1} parent=39 // pred_check
          %p876 = pneg %p178
        $region46: #{tpu_custom_call.1} parent=39 // pred_check_branch
          %878 = sbr.rel (%p876) target = $region48
        $region47: #{tpu_custom_call.1} parent=39 // pred_region
          %s880 = ssub.s32 256, 256
          %881 = vsyncadd %s856, %s880
          %s882 = smul.addr %s24, 4
          %s883 = smul.addr %s882, 64
          %s884 = scalar_lea.hbm %s6, %s883
          %s885 = sshll.u32 %s859, 4
          %s886 = int_to_ptr.vmem [resolvable:$true] %s885
          %891 = dma.vmem_to_hbm [thread:$0]  %s886, 256, %s884, %s856, 64, 64, 4
        $region48: #{tpu_custom_call.1} parent=39 // pred_fallthru
          _
      $region40: #{tpu_custom_call.1} parent=5 // pred_fallthru
        _
      %p892 = scmp.le.s32.totalorder 2, %s19
      // Predicated region
      $region49: #{tpu_custom_call.1} parent=5 // pred_check
        %p893 = pneg %p892
      $region50: #{tpu_custom_call.1} parent=5 // pred_check_branch
        %895 = sbr.rel (%p893) target = $region52
      $region51: #{tpu_custom_call.1} parent=5 // pred_region
        %s896 = ssub.s32 %s19, 2
        // Predicated region
        $region53: #{tpu_custom_call.1} parent=51 // pred_check
          %p897 = pneg %p158
        $region54: #{tpu_custom_call.1} parent=51 // pred_check_branch
          %899 = sbr.rel (%p897) target = $region56
        $region55: #{tpu_custom_call.1} parent=51 // pred_region
          %s900 = sand.u32 %s143, 1
          %s901 = scalar_lea.sflag [#allocation3], %s900
          %s902 = sand.u32 %s143, 1
          %s903 = smul.addr %s902, 16
          %s904 = scalar_lea.vmem [#allocation2], %s903
          %905 = dma.done %s901, 256
        $region56: #{tpu_custom_call.1} parent=51 // pred_fallthru
          _
        // Predicated region
        $region57: #{tpu_custom_call.1} parent=51 // pred_check
          %p906 = pneg %p184
        $region58: #{tpu_custom_call.1} parent=51 // pred_check_branch
          %908 = sbr.rel (%p906) target = $region60
        $region59: #{tpu_custom_call.1} parent=51 // pred_region
          %s909 = sand.u32 %s169, 1
          %s910 = scalar_lea.sflag [#allocation5], %s909
          %s911 = sand.u32 %s169, 1
          %s912 = smul.addr %s911, 16
          %s913 = scalar_lea.vmem [#allocation4], %s912
          %914 = dma.done %s910, 256
        $region60: #{tpu_custom_call.1} parent=51 // pred_fallthru
          _
      $region52: #{tpu_custom_call.1} parent=5 // pred_fallthru
        _
    $region6: #{tpu_custom_call.1} parent=1 // loop_footer
      %s23 = sadd.s32 1, %s19
    $region7: #{tpu_custom_call.1} parent=1 // loop_footer_branch
      %18 = sbr.rel target = $region3
    $region8: #{tpu_custom_call.1} parent=1 // loop_exit
      _
    %915 = vsyncpa [#allocation3], 1
    %s916 = scalar_lea.sflag [#allocation3], 1
    %917 = vsyncpa %s916, 1
    %918 = vsyncpa [#allocation5], 1
    %s919 = scalar_lea.sflag [#allocation5], 1
    %920 = vsyncpa %s919, 1

</llo_original>
